<compile_context>
chip_gen: v6e
topology: v6e:2x2x1
jax: 0.10.0
libtpu: 0.0.40
codegen_flags: <defaults>
</compile_context>

<pallas_src>
import jax
import jax.numpy as jnp
from jax import lax
from jax.experimental import pallas as pl
from jax.experimental.pallas import tpu as pltpu

EPS = 1e-5
SUBLANE = 8
_DEFAULT_SCOPED_VMEM = 32 * 1024 * 1024   # default scoped VMEM limit (v6e/v7x)
_V7X_VMEM = 64 * 1024 * 1024              # smallest physical VMEM across generations


def _round_up(n, m):
    return (n + m - 1) // m * m


def _mlp_kernel(x_ref, w1_ref, b1_ref, w2_ref, b2_ref, w3_ref, b3_ref, o_ref):
    # x arrives f32 and is cast to bf16 in-kernel (keeps the MXU on the fast bf16
    # path with f32 accumulation and an f32 bias/ReLU epilogue; no host-side copy).
    x = x_ref[...].astype(jnp.bfloat16)

    # layer 1: Linear (eval-mode BN already folded into w1/b1) + ReLU
    h = jnp.dot(x, w1_ref[...], preferred_element_type=jnp.float32)
    h = jnp.maximum(h + b1_ref[...], 0.0)

    # layer 2: Linear (BN folded) + ReLU
    h = jnp.dot(h.astype(jnp.bfloat16), w2_ref[...], preferred_element_type=jnp.float32)
    h = jnp.maximum(h + b2_ref[...], 0.0)

    # output layer: Linear
    o = jnp.dot(h.astype(jnp.bfloat16), w3_ref[...], preferred_element_type=jnp.float32)
    o_ref[...] = (o + b3_ref[...]).astype(o_ref.dtype)


def prepare_params(params):
    """One-time weight prep: fold eval-mode BatchNorm into the preceding Linear
    (f32 algebra) and cast matmul weights to bf16.  Call once, reuse across forwards."""
    s1 = params["g1"] * lax.rsqrt(params["v1"] + EPS)              # (1, h1)
    w1 = (params["w1"] * s1).astype(jnp.bfloat16)                  # scale columns
    b1 = (params["b1"] - params["m1"]) * s1 + params["be1"]        # f32 bias
    s2 = params["g2"] * lax.rsqrt(params["v2"] + EPS)
    w2 = (params["w2"] * s2).astype(jnp.bfloat16)
    b2 = (params["b2"] - params["m2"]) * s2 + params["be2"]
    w3 = params["w3"].astype(jnp.bfloat16)
    b3 = params["b3"]
    return dict(w1=w1, b1=b1, w2=w2, b2=b2, w3=w3, b3=b3)


def _pick_batch_tile(B, cap):
    """Multiple-of-8 batch tile that minimizes ragged waste; capped so that larger
    batches produce >= 2 grid steps (v7x megacore) without huge padding."""
    cap = max(SUBLANE, _round_up(cap, SUBLANE))
    if B <= cap:
        return min(cap, _round_up(B, SUBLANE))
    n_tiles = pl.cdiv(B, cap)
    return _round_up(pl.cdiv(B, n_tiles), SUBLANE)


def mlp_forward(x, prep, *, batch_tile_cap=256, out_dtype=jnp.float32):
    """x: (B, D_in) float32.  prep: output of prepare_params() (reused across calls)."""
    B, d_in = x.shape
    w1, b1 = prep["w1"], prep["b1"]
    w2, b2 = prep["w2"], prep["b2"]
    w3, b3 = prep["w3"], prep["b3"]
    h1, h2, d_out = w1.shape[1], w2.shape[1], w3.shape[1]
    assert w1.shape[0] == d_in and w2.shape[0] == h1 and w3.shape[0] == h2

    tb = _pick_batch_tile(B, batch_tile_cap)
    grid = (pl.cdiv(B, tb),)          # ragged last tile handled by Pallas (masked writes)

    def const_spec(a):
        # Full-array block, identical for every grid step -> a single VMEM buffer
        # (no pointless double-buffering of the resident weights/biases).
        return pl.BlockSpec(a.shape, lambda i: (0, 0), pipeline_mode=pl.Buffered(1))

    # True (unpadded) cost for XLA's scheduler.
    out_bytes = jnp.dtype(out_dtype).itemsize
    flops = 2 * B * (d_in * h1 + h1 * h2 + h2 * d_out)
    bytes_accessed = (x.size * x.dtype.itemsize
                      + (w1.size + w2.size + w3.size) * 2
                      + (b1.size + b2.size + b3.size) * 4
                      + B * d_out * out_bytes)

    # VMEM budget: x/out tiles double-buffered by the pipeline, weights single-buffered.
    vmem_needed = (2 * tb * d_in * 4 + 2 * tb * d_out * out_bytes
                   + (w1.size + w2.size + w3.size) * 2
                   + (b1.size + b2.size + b3.size) * 4)
    vmem_limit = None
    if 2 * vmem_needed > _DEFAULT_SCOPED_VMEM:
        vmem_limit = int(min(2 * vmem_needed, _V7X_VMEM))

    return pl.pallas_call(
        _mlp_kernel,
        out_shape=jax.ShapeDtypeStruct((B, d_out), out_dtype),
        grid_spec=pltpu.PrefetchScalarGridSpec(
            num_scalar_prefetch=0,
            grid=grid,
            in_specs=[
                pl.BlockSpec((tb, d_in), lambda i: (i, 0)),     # x: tiled over batch only
                const_spec(w1), const_spec(b1),
                const_spec(w2), const_spec(b2),
                const_spec(w3), const_spec(b3),
            ],
            out_specs=pl.BlockSpec((tb, d_out), lambda i: (i, 0)),
        ),
        compiler_params=pltpu.CompilerParams(
            dimension_semantics=("parallel",),
            vmem_limit_bytes=vmem_limit),
        cost_estimate=pl.CostEstimate(flops=flops, transcendentals=0,
                                      bytes_accessed=int(bytes_accessed)),
    )(x, w1, b1, w2, b2, w3, b3)


def init_params(key, input_dim, hidden_dims, output_dim):
    """Deterministic synthetic parameters (shapes match nn.Linear / nn.BatchNorm1d)."""
    assert len(hidden_dims) == 2, "this fused kernel is written for two hidden layers"
    h1, h2 = hidden_dims
    ks = jax.random.split(key, 16)
    k = iter(ks)

    def linear(kw, kb, din, dout):
        # torch stores weight as (dout, din); we keep the transposed (din, dout) layout.
        bound = 1.0 / jnp.sqrt(din)
        w = jax.random.uniform(kw, (din, dout), jnp.float32, -bound, bound)
        b = jax.random.uniform(kb, (1, dout), jnp.float32, -bound, bound)
        return w, b

    w1, b1 = linear(next(k), next(k), input_dim, h1)
    w2, b2 = linear(next(k), next(k), h1, h2)
    w3, b3 = linear(next(k), next(k), h2, output_dim)

    def bn(kg, kb, km, kv, dim):
        g = 1.0 + 0.1 * jax.random.normal(kg, (1, dim), jnp.float32)
        be = 0.1 * jax.random.normal(kb, (1, dim), jnp.float32)
        m = 0.1 * jax.random.normal(km, (1, dim), jnp.float32)
        v = jnp.abs(1.0 + 0.1 * jax.random.normal(kv, (1, dim), jnp.float32))
        return g, be, m, v

    g1, be1, m1, v1 = bn(next(k), next(k), next(k), next(k), h1)
    g2, be2, m2, v2 = bn(next(k), next(k), next(k), next(k), h2)

    return dict(w1=w1, b1=b1, g1=g1, be1=be1, m1=m1, v1=v1,
                w2=w2, b2=b2, g2=g2, be2=be2, m2=m2, v2=v2,
                w3=w3, b3=b3)


def mlp_reference(x, p):
    """Pure-JAX f32 reference mirroring the torch forward (eval-mode BN, unfused)."""
    h = x @ p["w1"] + p["b1"]
    h = (h - p["m1"]) * lax.rsqrt(p["v1"] + EPS) * p["g1"] + p["be1"]
    h = jnp.maximum(h, 0.0)
    h = h @ p["w2"] + p["b2"]
    h = (h - p["m2"]) * lax.rsqrt(p["v2"] + EPS) * p["g2"] + p["be2"]
    h = jnp.maximum(h, 0.0)
    return h @ p["w3"] + p["b3"]


if __name__ == "__main__":
    key = jax.random.PRNGKey(0)
    kx, kp = jax.random.split(key)

    # MLP(input_dim=32, hidden_dims=[64, 128], output_dim=32), batch = 8
    B, D_IN, H1, H2, D_OUT = 8, 32, 64, 128, 32
    x = jax.random.normal(kx, (B, D_IN), jnp.float32)
    params = init_params(kp, D_IN, [H1, H2], D_OUT)

    # one-time weight prep (BN fold + bf16 cast), reused for every forward
    prep = prepare_params(params)

    out = jax.block_until_ready(mlp_forward(x, prep))
    ref = mlp_reference(x, params)

    assert out.shape == (B, D_OUT)
    # bf16 MXU operands (incl. x cast in-kernel) with f32 accumulation ->
    # tolerance loosened knowingly vs the pure-f32 reference.
    assert jnp.allclose(out, ref, atol=3e-2, rtol=3e-2), "mismatch vs reference"

    print("KERNEL_OK")
</pallas_src>

<mosaic_0001>
module attributes {stable_mosaic.version = 11 : i64} {
  func.func @_mlp_kernel(%arg0: i32, %arg1: memref<8x32xf32, #tpu.memory_space<vmem>>, %arg2: memref<32x64xbf16, #tpu.memory_space<vmem>>, %arg3: memref<1x64xf32, #tpu.memory_space<vmem>>, %arg4: memref<64x128xbf16, #tpu.memory_space<vmem>>, %arg5: memref<1x128xf32, #tpu.memory_space<vmem>>, %arg6: memref<128x32xbf16, #tpu.memory_space<vmem>>, %arg7: memref<1x32xf32, #tpu.memory_space<vmem>>, %arg8: memref<8x32xf32, #tpu.memory_space<vmem>>) attributes {dimension_semantics = [#tpu.dimension_semantics<parallel>], iteration_bounds = array<i64: 1>, scalar_prefetch = 0 : i64, scratch_operands = 0 : i64, tpu.core_type = #tpu.core_type<tc>, window_params = [{transform_indices = @transform_0, window_bounds = array<i64: 8, 32>}, {pipeline_mode = #tpu.pipeline_mode<synchronous>, transform_indices = @transform_1, window_bounds = array<i64: 32, 64>}, {pipeline_mode = #tpu.pipeline_mode<synchronous>, transform_indices = @transform_2, window_bounds = array<i64: 1, 64>}, {pipeline_mode = #tpu.pipeline_mode<synchronous>, transform_indices = @transform_3, window_bounds = array<i64: 64, 128>}, {pipeline_mode = #tpu.pipeline_mode<synchronous>, transform_indices = @transform_4, window_bounds = array<i64: 1, 128>}, {pipeline_mode = #tpu.pipeline_mode<synchronous>, transform_indices = @transform_5, window_bounds = array<i64: 128, 32>}, {pipeline_mode = #tpu.pipeline_mode<synchronous>, transform_indices = @transform_6, window_bounds = array<i64: 1, 32>}, {transform_indices = @transform_7, window_bounds = array<i64: 8, 32>}]} {
    %c0 = arith.constant 0 : index
    %c0_0 = arith.constant 0 : index
    %0 = vector.load %arg1[%c0, %c0_0] : memref<8x32xf32, #tpu.memory_space<vmem>>, vector<8x32xf32>
    %1 = arith.truncf %0 : vector<8x32xf32> to vector<8x32xbf16>
    %c0_1 = arith.constant 0 : index
    %c0_2 = arith.constant 0 : index
    %2 = vector.load %arg2[%c0_1, %c0_2] : memref<32x64xbf16, #tpu.memory_space<vmem>>, vector<32x64xbf16>
    %cst = arith.constant dense<0.000000e+00> : vector<8x64xf32>
    %3 = tpu.matmul %1, %2, %cst {dimension_numbers = #tpu.dot_dimension_numbers<[1], [0], [0], [1], [0, 0, 1, 1], [], []>} : vector<8x32xbf16>, vector<32x64xbf16>, vector<8x64xf32> -> vector<8x64xf32>
    %c0_3 = arith.constant 0 : index
    %c0_4 = arith.constant 0 : index
    %4 = vector.load %arg3[%c0_3, %c0_4] : memref<1x64xf32, #tpu.memory_space<vmem>>, vector<1x64xf32>
    %5 = vector.broadcast %4 : vector<1x64xf32> to vector<8x64xf32>
    %6 = arith.addf %3, %5 : vector<8x64xf32>
    %cst_5 = arith.constant 0.000000e+00 : f32
    %7 = vector.broadcast %cst_5 : f32 to vector<8x64xf32>
    %8 = arith.maximumf %6, %7 : vector<8x64xf32>
    %9 = arith.truncf %8 : vector<8x64xf32> to vector<8x64xbf16>
    %c0_6 = arith.constant 0 : index
    %c0_7 = arith.constant 0 : index
    %10 = vector.load %arg4[%c0_6, %c0_7] : memref<64x128xbf16, #tpu.memory_space<vmem>>, vector<64x128xbf16>
    %cst_8 = arith.constant dense<0.000000e+00> : vector<8x128xf32>
    %11 = tpu.matmul %9, %10, %cst_8 {dimension_numbers = #tpu.dot_dimension_numbers<[1], [0], [0], [1], [0, 0, 1, 1], [], []>} : vector<8x64xbf16>, vector<64x128xbf16>, vector<8x128xf32> -> vector<8x128xf32>
    %c0_9 = arith.constant 0 : index
    %c0_10 = arith.constant 0 : index
    %12 = vector.load %arg5[%c0_9, %c0_10] : memref<1x128xf32, #tpu.memory_space<vmem>>, vector<1x128xf32>
    %13 = vector.broadcast %12 : vector<1x128xf32> to vector<8x128xf32>
    %14 = arith.addf %11, %13 : vector<8x128xf32>
    %cst_11 = arith.constant 0.000000e+00 : f32
    %15 = vector.broadcast %cst_11 : f32 to vector<8x128xf32>
    %16 = arith.maximumf %14, %15 : vector<8x128xf32>
    %17 = arith.truncf %16 : vector<8x128xf32> to vector<8x128xbf16>
    %c0_12 = arith.constant 0 : index
    %c0_13 = arith.constant 0 : index
    %18 = vector.load %arg6[%c0_12, %c0_13] : memref<128x32xbf16, #tpu.memory_space<vmem>>, vector<128x32xbf16>
    %cst_14 = arith.constant dense<0.000000e+00> : vector<8x32xf32>
    %19 = tpu.matmul %17, %18, %cst_14 {dimension_numbers = #tpu.dot_dimension_numbers<[1], [0], [0], [1], [0, 0, 1, 1], [], []>} : vector<8x128xbf16>, vector<128x32xbf16>, vector<8x32xf32> -> vector<8x32xf32>
    %c0_15 = arith.constant 0 : index
    %c0_16 = arith.constant 0 : index
    %20 = vector.load %arg7[%c0_15, %c0_16] : memref<1x32xf32, #tpu.memory_space<vmem>>, vector<1x32xf32>
    %21 = vector.broadcast %20 : vector<1x32xf32> to vector<8x32xf32>
    %22 = arith.addf %19, %21 : vector<8x32xf32>
    %c0_17 = arith.constant 0 : index
    %c0_18 = arith.constant 0 : index
    %23 = vector.load %arg8[%c0_17, %c0_18] : memref<8x32xf32, #tpu.memory_space<vmem>>, vector<8x32xf32>
    tpu.vector_store %arg8[%c0_17, %c0_18], %22 {strides = array<i32>} : memref<8x32xf32, #tpu.memory_space<vmem>>, vector<8x32xf32>,
    return
  }
  func.func @transform_0(%arg0: i32) -> (i32, i32) {
    %c0_i32 = arith.constant 0 : i32
    %c0_i32_0 = arith.constant 0 : i32
    return %arg0, %c0_i32 : i32, i32
  }
  func.func @transform_1(%arg0: i32) -> (i32, i32) {
    %c0_i32 = arith.constant 0 : i32
    %c0_i32_0 = arith.constant 0 : i32
    %c0_i32_1 = arith.constant 0 : i32
    return %c0_i32, %c0_i32_0 : i32, i32
  }
  func.func @transform_2(%arg0: i32) -> (i32, i32) {
    %c0_i32 = arith.constant 0 : i32
    %c0_i32_0 = arith.constant 0 : i32
    %c0_i32_1 = arith.constant 0 : i32
    return %c0_i32, %c0_i32_0 : i32, i32
  }
  func.func @transform_3(%arg0: i32) -> (i32, i32) {
    %c0_i32 = arith.constant 0 : i32
    %c0_i32_0 = arith.constant 0 : i32
    %c0_i32_1 = arith.constant 0 : i32
    return %c0_i32, %c0_i32_0 : i32, i32
  }
  func.func @transform_4(%arg0: i32) -> (i32, i32) {
    %c0_i32 = arith.constant 0 : i32
    %c0_i32_0 = arith.constant 0 : i32
    %c0_i32_1 = arith.constant 0 : i32
    return %c0_i32, %c0_i32_0 : i32, i32
  }
  func.func @transform_5(%arg0: i32) -> (i32, i32) {
    %c0_i32 = arith.constant 0 : i32
    %c0_i32_0 = arith.constant 0 : i32
    %c0_i32_1 = arith.constant 0 : i32
    return %c0_i32, %c0_i32_0 : i32, i32
  }
  func.func @transform_6(%arg0: i32) -> (i32, i32) {
    %c0_i32 = arith.constant 0 : i32
    %c0_i32_0 = arith.constant 0 : i32
    %c0_i32_1 = arith.constant 0 : i32
    return %c0_i32, %c0_i32_0 : i32, i32
  }
  func.func @transform_7(%arg0: i32) -> (i32, i32) {
    %c0_i32 = arith.constant 0 : i32
    %c0_i32_0 = arith.constant 0 : i32
    return %arg0, %c0_i32 : i32, i32
  }
}

</mosaic_0001>

<llo_original>
// kernel: tpu_custom_call.1
$region0: #{tpu_custom_call.1}
  #allocation0 [shape = 'u32[]', space=smem, size = 0x4, offset = 0x4, fixed_abs, tag = 'smem constant byte address 0x4 - core index']
  #allocation1 [shape = 'u32[144,128]{1,0:T(1,128)}', space=vmem, size = 0x12000, scoped, tag = 'internal scratch']
  %s0 = inlined_call_operand.vmem [shape: f32[8,32], index: 0, kind: input, shape index: {}]
  %s1 = inlined_call_operand.vmem [shape: bf16[32,64], index: 1, kind: input, shape index: {}]
  %s2 = inlined_call_operand.vmem [shape: f32[1,64], index: 2, kind: input, shape index: {}]
  %s3 = inlined_call_operand.vmem [shape: bf16[64,128], index: 3, kind: input, shape index: {}]
  %s4 = inlined_call_operand.vmem [shape: f32[1,128], index: 4, kind: input, shape index: {}]
  %s5 = inlined_call_operand.vmem [shape: bf16[128,32], index: 5, kind: input, shape index: {}]
  %s6 = inlined_call_operand.vmem [shape: f32[1,32], index: 6, kind: input, shape index: {}]
  %s7 = inlined_call_operand.hbm [shape: f32[8,32], index: 7, kind: output, shape index: {}]
  %s8 = sld [smem:[#allocation0]]
  $region38: #{tpu_custom_call.1} parent=0
    _
  %s10 = ssub.s32 1, %s8
  %s11 = scalar_select 0, %s10, %s8
  $region1: #{tpu_custom_call.1} parent=0
    #allocation2 [shape = 'u8[4096]{0}', space=vmem, size = 0x1000, scoped, tag = 'output window, operand 0, single buffered']
    #allocation3 [shape = 's32[1]{0}', space=sflag, size = 0x4, scoped, tag = 'scoped memory for tpu_custom_call.1']
    %12 = vsyncpa [#allocation3], 0
    // Predicated region
    $region2: #{tpu_custom_call.1} parent=1 // pred_check
      _
    $region3: #{tpu_custom_call.1} parent=1 // pred_check_branch
      %14 = sbr.rel (0) target = $region5
    $region4: #{tpu_custom_call.1} parent=1 // pred_region
      _
    $region5: #{tpu_custom_call.1} parent=1 // pred_fallthru
      _
    // Predicated region
    $region6: #{tpu_custom_call.1} parent=1 // pred_check
      _
    $region7: #{tpu_custom_call.1} parent=1 // pred_check_branch
      %16 = sbr.rel (0) target = $region9
    $region8: #{tpu_custom_call.1} parent=1 // pred_region
      _
    $region9: #{tpu_custom_call.1} parent=1 // pred_fallthru
      _
    // Predicated region
    $region10: #{tpu_custom_call.1} parent=1 // pred_check
      _
    $region11: #{tpu_custom_call.1} parent=1 // pred_check_branch
      %18 = sbr.rel (0) target = $region13
    $region12: #{tpu_custom_call.1} parent=1 // pred_region
      _
    $region13: #{tpu_custom_call.1} parent=1 // pred_fallthru
      _
    // Predicated region
    $region14: #{tpu_custom_call.1} parent=1 // pred_check
      _
    $region15: #{tpu_custom_call.1} parent=1 // pred_check_branch
      %20 = sbr.rel (0) target = $region17
    $region16: #{tpu_custom_call.1} parent=1 // pred_region
      _
    $region17: #{tpu_custom_call.1} parent=1 // pred_fallthru
      _
    // Predicated region
    $region18: #{tpu_custom_call.1} parent=1 // pred_check
      _
    $region19: #{tpu_custom_call.1} parent=1 // pred_check_branch
      %22 = sbr.rel (0) target = $region21
    $region20: #{tpu_custom_call.1} parent=1 // pred_region
      _
    $region21: #{tpu_custom_call.1} parent=1 // pred_fallthru
      _
    // Predicated region
    $region22: #{tpu_custom_call.1} parent=1 // pred_check
      _
    $region23: #{tpu_custom_call.1} parent=1 // pred_check_branch
      %24 = sbr.rel (0) target = $region25
    $region24: #{tpu_custom_call.1} parent=1 // pred_region
      _
    $region25: #{tpu_custom_call.1} parent=1 // pred_fallthru
      _
    // Predicated region
    $region26: #{tpu_custom_call.1} parent=1 // pred_check
      _
    $region27: #{tpu_custom_call.1} parent=1 // pred_check_branch
      %26 = sbr.rel (0) target = $region29
    $region28: #{tpu_custom_call.1} parent=1 // pred_region
      _
    $region29: #{tpu_custom_call.1} parent=1 // pred_fallthru
      _
    %v28 = vld [vmem:[%s0] sm:$0xff]
    %v29 = vpack.c.bf16 %v28, %v28
    %v30 = vld [vmem:[%s1] sm:$0xf]
    %v31 = vld [vmem:[%s1 + $0x4] sm:$0xf]
    %v32 = vld [vmem:[%s1 + $0x8] sm:$0xf]
    %v33 = vld [vmem:[%s1 + $0xc] sm:$0xf]
    %v34 = vld [vmem:[%s2] sm:$0x1]
    %v36 = vlaneseq
    %v37 = vshrl.u32 %v36, 7
    %v38 = vsub.s32 0, %v37
    %v39 = vrot.slane %v34, %v38
    %v45 = vunpack.c.l.b16 %v30
    %v46 = vunpack.c.l.b16 %v31
    %v47 = vunpack.c.l.b16 %v32
    %v48 = vunpack.c.l.b16 %v33
    %v49 = vpack.c.b16 %v46, %v45
    %v50 = vpack.c.b16 %v48, %v47
    %vm53 = vcmask 261120
    %v55 = vsel %vm53, %v29, 0
    %57 = vmatprep.subr.bf16.mxu0 0
    %58 = vmatpush1.bf16.msra.mxu0 0
    %59 = vmatprep.subr.bf16.mxu0 0
    %60 = vmatpush1.bf16.msra.mxu0 0
    %61 = vmatprep.subr.bf16.mxu0 0
    %62 = vmatpush1.bf16.msra.mxu0 0
    %63 = vmatprep.subr.bf16.mxu0 0
    %64 = vmatpush1.bf16.msra.mxu0 0
    %65 = vmatprep.subr.bf16.mxu0 0
    %66 = vmatpush1.bf16.msra.mxu0 0
    %67 = vmatprep.subr.bf16.mxu0 0
    %68 = vmatpush1.bf16.msra.mxu0 0
    %69 = vmatprep.subr.bf16.mxu0 0
    %70 = vmatpush1.bf16.msra.mxu0 %v50
    %71 = vmatprep.subr.bf16.mxu0 0
    %72 = vmatpush1.bf16.msra.mxu0 %v49
    %73 = vmatprep.subr.bf16.mxu0 0
    %74 = vmatpush2.bf16.msra.mxu0 0
    %75 = vmatprep.subr.bf16.mxu0 0
    %76 = vmatpush2.bf16.msra.mxu0 0
    %77 = vmatprep.subr.bf16.mxu0 0
    %78 = vmatpush2.bf16.msra.mxu0 0
    %79 = vmatprep.subr.bf16.mxu0 0
    %80 = vmatpush2.bf16.msra.mxu0 0
    %81 = vmatprep.subr.bf16.mxu0 0
    %82 = vmatpush2.bf16.msra.mxu0 0
    %83 = vmatprep.subr.bf16.mxu0 0
    %84 = vmatpush2.bf16.msra.mxu0 0
    %85 = vmatprep.subr.bf16.mxu0 0
    %86 = vmatpush2.bf16.msra.mxu0 0
    %87 = vmatprep.subr.bf16.mxu0 0
    %88 = vmatpush2.bf16.msra.mxu0 0
    %89 = vmatprep.mubr.bf16.mxu0 0
    %90 = vmatmul.mubr.bf16.gmra.mxu0 %v55
    %v91 = vpop.f32.mrf.mxu0
    %v92 = vadd.f32 %v39, %v91
    %v93 = vpop.f32.mrf.mxu0
    %v94 = vpop.f32.mrf.mxu0
    %v95 = vpop.f32.mrf.mxu0
    %96 = vdwg.mxu0
    %v97 = vmax.f32 %v92, 0.0
    %v98 = vpack.c.bf16 %v97, %v97
    %v99 = vld [vmem:[%s3] sm:$0xf]
    %v100 = vld [vmem:[%s3 + $0x4] sm:$0xf]
    %v101 = vld [vmem:[%s3 + $0x8] sm:$0xf]
    %v102 = vld [vmem:[%s3 + $0xc] sm:$0xf]
    %v103 = vld [vmem:[%s3 + $0x10] sm:$0xf]
    %v104 = vld [vmem:[%s3 + $0x14] sm:$0xf]
    %v105 = vld [vmem:[%s3 + $0x18] sm:$0xf]
    %v106 = vld [vmem:[%s3 + $0x1c] sm:$0xf]
    %v107 = vld [vmem:[%s4] sm:$0x1]
    %v109 = vlaneseq
    %v110 = vshrl.u32 %v109, 7
    %v111 = vsub.s32 0, %v110
    %v112 = vrot.slane %v107, %v111
    %v122 = vunpack.c.l.b16 %v99
    %v123 = vunpack.c.l.b16 %v100
    %v124 = vunpack.c.l.b16 %v101
    %v125 = vunpack.c.l.b16 %v102
    %v126 = vunpack.c.l.b16 %v103
    %v127 = vunpack.c.l.b16 %v104
    %v128 = vunpack.c.l.b16 %v105
    %v129 = vunpack.c.l.b16 %v106
    %v130 = vpack.c.b16 %v123, %v122
    %v131 = vpack.c.b16 %v125, %v124
    %v132 = vpack.c.b16 %v127, %v126
    %v133 = vpack.c.b16 %v129, %v128
    %vm138 = vcmask 523264
    %v140 = vsel %vm138, %v98, 0
    %142 = vmatprep.subr.bf16.mxu0 0
    %143 = vmatpush1.bf16.msra.mxu0 0
    %144 = vmatprep.subr.bf16.mxu0 0
    %145 = vmatpush1.bf16.msra.mxu0 0
    %146 = vmatprep.subr.bf16.mxu0 0
    %147 = vmatpush1.bf16.msra.mxu0 0
    %148 = vmatprep.subr.bf16.mxu0 0
    %149 = vmatpush1.bf16.msra.mxu0 0
    %150 = vmatprep.subr.bf16.mxu0 0
    %151 = vmatpush1.bf16.msra.mxu0 %v133
    %152 = vmatprep.subr.bf16.mxu0 0
    %153 = vmatpush1.bf16.msra.mxu0 %v132
    %154 = vmatprep.subr.bf16.mxu0 0
    %155 = vmatpush1.bf16.msra.mxu0 %v131
    %156 = vmatprep.subr.bf16.mxu0 0
    %157 = vmatpush1.bf16.msra.mxu0 %v130
    %158 = vmatprep.subr.bf16.mxu0 0
    %159 = vmatpush2.bf16.msra.mxu0 0
    %160 = vmatprep.subr.bf16.mxu0 0
    %161 = vmatpush2.bf16.msra.mxu0 0
    %162 = vmatprep.subr.bf16.mxu0 0
    %163 = vmatpush2.bf16.msra.mxu0 0
    %164 = vmatprep.subr.bf16.mxu0 0
    %165 = vmatpush2.bf16.msra.mxu0 0
    %166 = vmatprep.subr.bf16.mxu0 0
    %167 = vmatpush2.bf16.msra.mxu0 0
    %168 = vmatprep.subr.bf16.mxu0 0
    %169 = vmatpush2.bf16.msra.mxu0 0
    %170 = vmatprep.subr.bf16.mxu0 0
    %171 = vmatpush2.bf16.msra.mxu0 0
    %172 = vmatprep.subr.bf16.mxu0 0
    %173 = vmatpush2.bf16.msra.mxu0 0
    %174 = vmatprep.mubr.bf16.mxu0 0
    %175 = vmatmul.mubr.bf16.gmra.mxu0 %v140
    %v176 = vpop.f32.mrf.mxu0
    %v177 = vadd.f32 %v112, %v176
    %v178 = vpop.f32.mrf.mxu0
    %v179 = vpop.f32.mrf.mxu0
    %v180 = vpop.f32.mrf.mxu0
    %181 = vdwg.mxu0
    %v182 = vmax.f32 %v177, 0.0
    %v183 = vpack.c.bf16 %v182, %v182
    %v184 = vld [vmem:[%s5] sm:$0xf]
    %v185 = vld [vmem:[%s5 + $0x4] sm:$0xf]
    %v186 = vld [vmem:[%s5 + $0x8] sm:$0xf]
    %v187 = vld [vmem:[%s5 + $0xc] sm:$0xf]
    %v188 = vld [vmem:[%s5 + $0x10] sm:$0xf]
    %v189 = vld [vmem:[%s5 + $0x14] sm:$0xf]
    %v190 = vld [vmem:[%s5 + $0x18] sm:$0xf]
    %v191 = vld [vmem:[%s5 + $0x1c] sm:$0xf]
    %v192 = vld [vmem:[%s5 + $0x20] sm:$0xf]
    %v193 = vld [vmem:[%s5 + $0x24] sm:$0xf]
    %v194 = vld [vmem:[%s5 + $0x28] sm:$0xf]
    %v195 = vld [vmem:[%s5 + $0x2c] sm:$0xf]
    %v196 = vld [vmem:[%s5 + $0x30] sm:$0xf]
    %v197 = vld [vmem:[%s5 + $0x34] sm:$0xf]
    %v198 = vld [vmem:[%s5 + $0x38] sm:$0xf]
    %v199 = vld [vmem:[%s5 + $0x3c] sm:$0xf]
    %v200 = vld [vmem:[%s6] sm:$0x1]
    %v202 = vlaneseq
    %v203 = vshrl.u32 %v202, 7
    %v204 = vsub.s32 0, %v203
    %v205 = vrot.slane %v200, %v204
    %v223 = vunpack.c.l.b16 %v184
    %v224 = vunpack.c.l.b16 %v185
    %v225 = vunpack.c.l.b16 %v186
    %v226 = vunpack.c.l.b16 %v187
    %v227 = vunpack.c.l.b16 %v188
    %v228 = vunpack.c.l.b16 %v189
    %v229 = vunpack.c.l.b16 %v190
    %v230 = vunpack.c.l.b16 %v191
    %v231 = vunpack.c.l.b16 %v192
    %v232 = vunpack.c.l.b16 %v193
    %v233 = vunpack.c.l.b16 %v194
    %v234 = vunpack.c.l.b16 %v195
    %v235 = vunpack.c.l.b16 %v196
    %v236 = vunpack.c.l.b16 %v197
    %v237 = vunpack.c.l.b16 %v198
    %v238 = vunpack.c.l.b16 %v199
    %v239 = vpack.c.b16 %v224, %v223
    %v240 = vpack.c.b16 %v226, %v225
    %v241 = vpack.c.b16 %v228, %v227
    %v242 = vpack.c.b16 %v230, %v229
    %v243 = vpack.c.b16 %v232, %v231
    %v244 = vpack.c.b16 %v234, %v233
    %v245 = vpack.c.b16 %v236, %v235
    %v246 = vpack.c.b16 %v238, %v237
    %255 = vmatprep.subr.bf16.mxu0 0
    %256 = vmatpush1.bf16.msra.mxu0 %v246
    %257 = vmatprep.subr.bf16.mxu0 0
    %258 = vmatpush1.bf16.msra.mxu0 %v245
    %259 = vmatprep.subr.bf16.mxu0 0
    %260 = vmatpush1.bf16.msra.mxu0 %v244
    %261 = vmatprep.subr.bf16.mxu0 0
    %262 = vmatpush1.bf16.msra.mxu0 %v243
    %263 = vmatprep.subr.bf16.mxu0 0
    %264 = vmatpush1.bf16.msra.mxu0 %v242
    %265 = vmatprep.subr.bf16.mxu0 0
    %266 = vmatpush1.bf16.msra.mxu0 %v241
    %267 = vmatprep.subr.bf16.mxu0 0
    %268 = vmatpush1.bf16.msra.mxu0 %v240
    %269 = vmatprep.subr.bf16.mxu0 0
    %270 = vmatpush1.bf16.msra.mxu0 %v239
    %271 = vmatprep.subr.bf16.mxu0 0
    %272 = vmatpush2.bf16.msra.mxu0 0
    %273 = vmatprep.subr.bf16.mxu0 0
    %274 = vmatpush2.bf16.msra.mxu0 0
    %275 = vmatprep.subr.bf16.mxu0 0
    %276 = vmatpush2.bf16.msra.mxu0 0
    %277 = vmatprep.subr.bf16.mxu0 0
    %278 = vmatpush2.bf16.msra.mxu0 0
    %279 = vmatprep.subr.bf16.mxu0 0
    %280 = vmatpush2.bf16.msra.mxu0 0
    %281 = vmatprep.subr.bf16.mxu0 0
    %282 = vmatpush2.bf16.msra.mxu0 0
    %283 = vmatprep.subr.bf16.mxu0 0
    %284 = vmatpush2.bf16.msra.mxu0 0
    %285 = vmatprep.subr.bf16.mxu0 0
    %286 = vmatpush2.bf16.msra.mxu0 0
    %287 = vmatprep.mubr.bf16.mxu0 0
    %288 = vmatmul.mubr.bf16.gmra.mxu0 %v183
    %v289 = vpop.f32.mrf.mxu0
    %v290 = vadd.f32 %v205, %v289
    %v291 = vpop.f32.mrf.mxu0
    %v292 = vpop.f32.mrf.mxu0
    %v293 = vpop.f32.mrf.mxu0
    %294 = vdwg.mxu0
    %295 = vst.msk [vmem:[#allocation2] sm:$0xff] %vm53, %v290
    // Predicated region
    $region30: #{tpu_custom_call.1} parent=1 // pred_check
      _
    $region31: #{tpu_custom_call.1} parent=1 // pred_check_branch
      %297 = sbr.rel (0) target = $region33
    $region32: #{tpu_custom_call.1} parent=1 // pred_region
      %s299 = ssub.s32 128, 128
      %300 = vsyncadd [#allocation3], %s299
      %s302 = sshll.u32 [#allocation2], 4
      %s303 = int_to_ptr.vmem [resolvable:$true] %s302
      %305 = dma.vmem_to_hbm [thread:$0]  %s303, 128, %s7, [#allocation3]
    $region33: #{tpu_custom_call.1} parent=1 // pred_fallthru
      _
    // Predicated region
    $region34: #{tpu_custom_call.1} parent=1 // pred_check
      _
    $region35: #{tpu_custom_call.1} parent=1 // pred_check_branch
      %307 = sbr.rel (0) target = $region37
    $region36: #{tpu_custom_call.1} parent=1 // pred_region
      %308 = dma.done [#allocation3], 128
    $region37: #{tpu_custom_call.1} parent=1 // pred_fallthru
      _
    %309 = vsyncpa [#allocation3], 1

</llo_original>
